<compile_context>
chip_gen: v7x
topology: tpu7x:2x2x1
jax: 0.10.0
libtpu: 0.0.40
codegen_flags: <defaults>
</compile_context>

<pallas_src>
import math

import jax
import jax.numpy as jnp
from jax.experimental import pallas as pl
from jax.experimental.pallas import tpu as pltpu

DEFAULT_EPS = 1e-6

# Keep ~1 MiB of f32 per direction per grid step (measured HBM-roofline sweet spot).
_MAX_TILE_ELEMS = 256 * 1024


def _cdiv(a, b):
    return -(-a // b)


def _round_up(a, b):
    return _cdiv(a, b) * b


def _make_packed_kernel(inv_d, inv_dm1, eps):
    """D < 128 and 128 % D == 0: G = 128//D rows folded per 128-lane row.

    Per-row (segmented) statistics via a block-diagonal ones matrix on the MXU.
    sum and sum-of-squares are two independent dots (no MXU drain between them);
    one-pass unbiased variance, clamped at 0 against cancellation.
    """

    def kernel(x_ref, a2_ref, b2_ref, seg_ref, o_ref):
        x = x_ref[...].astype(jnp.float32)                 # (TM, 128) lane-dense
        seg = seg_ref[...]                                 # (128, 128) block-diag ones
        s1 = jnp.dot(x, seg, preferred_element_type=jnp.float32)       # seg sums
        s2 = jnp.dot(x * x, seg, preferred_element_type=jnp.float32)   # seg sumsq
        mean = s1 * inv_d
        var = jnp.maximum(s2 - s1 * mean, 0.0) * inv_dm1               # unbiased
        inv = pl.reciprocal(jnp.sqrt(var) + eps, approx=False)         # exact
        o_ref[...] = ((x - mean) * (a2_ref[...] * inv) + b2_ref[...]).astype(o_ref.dtype)

    return kernel


def _make_rowwise_kernel(inv_d, inv_dm1, eps):
    """General D (>= 128 or not a divisor of 128): per-row lane reduction, two-pass."""

    def kernel(x_ref, a2_ref, b2_ref, o_ref):
        x = x_ref[...].astype(jnp.float32)                 # (TM, D)
        mean = jnp.sum(x, axis=-1, keepdims=True) * inv_d
        diff = x - mean
        var = jnp.sum(diff * diff, axis=-1, keepdims=True) * inv_dm1
        inv = pl.reciprocal(jnp.sqrt(var) + eps, approx=False)
        o_ref[...] = (a2_ref[...] * (diff * inv) + b2_ref[...]).astype(o_ref.dtype)

    return kernel


def layer_norm(x, a2, b2, *, eps=DEFAULT_EPS, tm=2048):
    """LayerNorm over the last axis of x (any leading shape), torch-unbiased std."""
    orig_shape = x.shape
    D = orig_shape[-1]
    assert D > 1, "unbiased std needs D > 1 (matches torch semantics)"
    rows = math.prod(orig_shape[:-1])
    out_dtype = x.dtype
    in_bytes = jnp.dtype(x.dtype).itemsize
    out_bytes = in_bytes
    row_align = 8 * max(1, 4 // in_bytes)      # 8 for f32, 16 for bf16, 32 for 8-bit

    x2 = x.reshape(rows, D)                    # contiguous -> free

    # Lane-dense packing: fold G consecutive rows into one 128-lane row.
    G = 128 // D if (D < 128 and 128 % D == 0) else 1
    L = G * D

    # Only pad rows to a multiple of G (<= G-1 rows, rarely triggered).
    rows_g = _round_up(rows, G)
    if rows_g != rows:
        x2 = jnp.pad(x2, ((0, rows_g - rows), (0, 0)))
    packed_rows = rows_g // G
    xp = x2.reshape(packed_rows, L)            # contiguous -> free

    a2f = a2.reshape(1, D).astype(jnp.float32)
    b2f = b2.reshape(1, D).astype(jnp.float32)
    if G > 1:
        a2f = jnp.tile(a2f, (1, G))
        b2f = jnp.tile(b2f, (1, G))

    inv_d = 1.0 / D                            # trace-time constants
    inv_dm1 = 1.0 / (D - 1)

    # Row-tile choice:
    #  * tm_budget: ~1 MiB f32 per direction per step + bounded VMEM footprint.
    #  * tm_split : guarantee >= ~4 grid steps when rows allow, so the "parallel"
    #    axis is actually sharded across both v7x TensorCores and each core still
    #    has something to pipeline.
    tm_req = max(row_align, _round_up(tm, row_align))
    tm_budget = max(row_align, (_MAX_TILE_ELEMS // L) // row_align * row_align)
    tm_split = _round_up(_cdiv(packed_rows, 4), row_align)
    tm_eff = max(row_align, min(tm_req, tm_budget, tm_split))
    if tm_eff >= packed_rows:
        tm_eff = packed_rows                   # single block == full dim (any size)
    grid = (_cdiv(packed_rows, tm_eff),)       # ragged last block: OOB rows are
                                               # computed independently and masked
                                               # on store; no wrapper-side padding.

    x_spec = pl.BlockSpec((tm_eff, L), lambda i: (i, 0))
    param_spec = pl.BlockSpec((1, L), lambda i: (0, 0))       # resident (constant map)
    out_spec = pl.BlockSpec((tm_eff, L), lambda i: (i, 0))

    if G > 1:
        seg_ids = jnp.arange(L, dtype=jnp.int32) // D
        seg = (seg_ids[:, None] == seg_ids[None, :]).astype(jnp.float32)
        kernel = _make_packed_kernel(inv_d, inv_dm1, eps)
        in_specs = [x_spec, param_spec, param_spec,
                    pl.BlockSpec((L, L), lambda i: (0, 0))]
        args = (xp, a2f, b2f, seg)
        flops = 2 * 2 * packed_rows * L * L + 7 * packed_rows * L
        transcendentals = 2 * packed_rows * L
        extra_bytes = L * L * 4
    else:
        kernel = _make_rowwise_kernel(inv_d, inv_dm1, eps)
        in_specs = [x_spec, param_spec, param_spec]
        args = (xp, a2f, b2f)
        flops = 9 * packed_rows * L
        transcendentals = 2 * packed_rows
        extra_bytes = 0

    cost = pl.CostEstimate(
        flops=flops,
        transcendentals=transcendentals,
        bytes_accessed=packed_rows * L * (in_bytes + out_bytes) + 2 * L * 4 + extra_bytes,
    )

    # Double-buffered in+out tiles plus headroom for f32 intermediates; cap at
    # 48 MiB so we never overshoot v7x's 64 MiB physical VMEM.
    data_bytes = 2 * tm_eff * L * (in_bytes + out_bytes)
    vmem_limit = int(min(48 << 20, max(32 << 20, 2 * data_bytes + (16 << 20))))

    out = pl.pallas_call(
        kernel,
        out_shape=jax.ShapeDtypeStruct((packed_rows, L), out_dtype),
        grid_spec=pltpu.PrefetchScalarGridSpec(
            num_scalar_prefetch=0,
            grid=grid,
            in_specs=in_specs,
            out_specs=out_spec,
        ),
        compiler_params=pltpu.CompilerParams(
            dimension_semantics=("parallel",),   # 2-TC sharding on v7x
            vmem_limit_bytes=vmem_limit,
        ),
        cost_estimate=cost,
    )(*args)

    out = out.reshape(rows_g, D)
    if rows_g != rows:
        out = out[:rows]
    return out.reshape(orig_shape)


def layer_norm_ref(x, a2, b2, eps=DEFAULT_EPS):
    xf = x.astype(jnp.float32)
    D = xf.shape[-1]
    mean = jnp.mean(xf, axis=-1, keepdims=True)
    diff = xf - mean
    std = jnp.sqrt(jnp.sum(diff * diff, axis=-1, keepdims=True) / (D - 1))
    return a2 * diff / (std + eps) + b2


if __name__ == "__main__":
    key = jax.random.PRNGKey(0)
    k1, k2, k3, k4, k5 = jax.random.split(key, 5)

    # Case 1: the module's typical shape (batch=2, seq=8, features=32) -> packed path.
    B, S, D = 2, 8, 32
    x = jax.random.normal(k1, (B, S, D), dtype=jnp.float32)
    a2 = 1.0 + 0.1 * jax.random.normal(k2, (D,), dtype=jnp.float32)
    b2 = 0.1 * jax.random.normal(k3, (D,), dtype=jnp.float32)
    out = jax.block_until_ready(layer_norm(x, a2, b2))
    ref = layer_norm_ref(x, a2, b2)
    assert out.shape == x.shape and out.dtype == x.dtype
    assert jnp.allclose(out, ref, atol=1e-4, rtol=1e-4), "mismatch (packed path)"

    # Case 2: features=128 -> rowwise path, multi-step grid.
    D2 = 128
    x_big = jax.random.normal(k4, (B, S, D2), dtype=jnp.float32)
    a2_big = jnp.ones((D2,), jnp.float32)
    b2_big = jnp.zeros((D2,), jnp.float32)
    out_big = jax.block_until_ready(layer_norm(x_big, a2_big, b2_big))
    ref_big = layer_norm_ref(x_big, a2_big, b2_big)
    assert jnp.allclose(out_big, ref_big, atol=1e-4, rtol=1e-4), "mismatch (rowwise path)"

    # Case 3: row count not a multiple of the row tile -> ragged last block path.
    x_rag = jax.random.normal(k5, (4, 50, D), dtype=jnp.float32)
    out_rag = jax.block_until_ready(layer_norm(x_rag, a2, b2))
    ref_rag = layer_norm_ref(x_rag, a2, b2)
    assert jnp.allclose(out_rag, ref_rag, atol=1e-4, rtol=1e-4), "mismatch (ragged grid)"

    # Case 4: bf16 input/output streamed natively (math stays f32 inside the kernel).
    x_bf = x.astype(jnp.bfloat16)
    out_bf = jax.block_until_ready(layer_norm(x_bf, a2, b2))
    ref_bf = layer_norm_ref(x_bf, a2, b2)
    assert out_bf.dtype == jnp.bfloat16
    assert jnp.allclose(out_bf.astype(jnp.float32), ref_bf, atol=5e-2, rtol=2e-2), "mismatch (bf16)"

    print("KERNEL_OK")
</pallas_src>

<mosaic_0001>
module attributes {stable_mosaic.version = 11 : i64} {
  func.func @kernel(%arg0: i32, %arg1: memref<4x128xf32, #tpu.memory_space<vmem>>, %arg2: memref<1x128xf32, #tpu.memory_space<vmem>>, %arg3: memref<1x128xf32, #tpu.memory_space<vmem>>, %arg4: memref<128x128xf32, #tpu.memory_space<vmem>>, %arg5: memref<4x128xf32, #tpu.memory_space<vmem>>) attributes {dimension_semantics = [#tpu.dimension_semantics<parallel>], iteration_bounds = array<i64: 1>, scalar_prefetch = 0 : i64, scratch_operands = 0 : i64, tpu.core_type = #tpu.core_type<tc>, window_params = [{transform_indices = @transform_0, window_bounds = array<i64: 4, 128>}, {pipeline_mode = #tpu.pipeline_mode<synchronous>, transform_indices = @transform_1, window_bounds = array<i64: 1, 128>}, {pipeline_mode = #tpu.pipeline_mode<synchronous>, transform_indices = @transform_2, window_bounds = array<i64: 1, 128>}, {pipeline_mode = #tpu.pipeline_mode<synchronous>, transform_indices = @transform_3, window_bounds = array<i64: 128, 128>}, {transform_indices = @transform_4, window_bounds = array<i64: 4, 128>}]} {
    %c0 = arith.constant 0 : index
    %c0_0 = arith.constant 0 : index
    %0 = vector.load %arg1[%c0, %c0_0] : memref<4x128xf32, #tpu.memory_space<vmem>>, vector<4x128xf32>
    %c0_1 = arith.constant 0 : index
    %c0_2 = arith.constant 0 : index
    %1 = vector.load %arg4[%c0_1, %c0_2] : memref<128x128xf32, #tpu.memory_space<vmem>>, vector<128x128xf32>
    %cst = arith.constant dense<0.000000e+00> : vector<4x128xf32>
    %2 = tpu.matmul %0, %1, %cst {dimension_numbers = #tpu.dot_dimension_numbers<[1], [0], [0], [1], [0, 0, 1, 1], [], []>} : vector<4x128xf32>, vector<128x128xf32>, vector<4x128xf32> -> vector<4x128xf32>
    %3 = arith.mulf %0, %0 : vector<4x128xf32>
    %cst_3 = arith.constant dense<0.000000e+00> : vector<4x128xf32>
    %4 = tpu.matmul %3, %1, %cst_3 {dimension_numbers = #tpu.dot_dimension_numbers<[1], [0], [0], [1], [0, 0, 1, 1], [], []>} : vector<4x128xf32>, vector<128x128xf32>, vector<4x128xf32> -> vector<4x128xf32>
    %cst_4 = arith.constant 3.125000e-02 : f32
    %5 = vector.broadcast %cst_4 : f32 to vector<4x128xf32>
    %6 = arith.mulf %2, %5 : vector<4x128xf32>
    %7 = arith.mulf %2, %6 : vector<4x128xf32>
    %8 = arith.subf %4, %7 : vector<4x128xf32>
    %cst_5 = arith.constant 0.000000e+00 : f32
    %9 = vector.broadcast %cst_5 : f32 to vector<4x128xf32>
    %10 = arith.maximumf %8, %9 : vector<4x128xf32>
    %cst_6 = arith.constant 0.0322580636 : f32
    %11 = vector.broadcast %cst_6 : f32 to vector<4x128xf32>
    %12 = arith.mulf %10, %11 : vector<4x128xf32>
    %13 = math.sqrt %12 : vector<4x128xf32>
    %cst_7 = arith.constant 9.99999997E-7 : f32
    %14 = vector.broadcast %cst_7 : f32 to vector<4x128xf32>
    %15 = arith.addf %13, %14 : vector<4x128xf32>
    %16 = tpu.reciprocal %15 : vector<4x128xf32> -> vector<4x128xf32>
    %17 = arith.subf %0, %6 : vector<4x128xf32>
    %c0_8 = arith.constant 0 : index
    %c0_9 = arith.constant 0 : index
    %18 = vector.load %arg2[%c0_8, %c0_9] : memref<1x128xf32, #tpu.memory_space<vmem>>, vector<1x128xf32>
    %19 = vector.broadcast %18 : vector<1x128xf32> to vector<4x128xf32>
    %20 = arith.mulf %19, %16 : vector<4x128xf32>
    %21 = arith.mulf %17, %20 : vector<4x128xf32>
    %c0_10 = arith.constant 0 : index
    %c0_11 = arith.constant 0 : index
    %22 = vector.load %arg3[%c0_10, %c0_11] : memref<1x128xf32, #tpu.memory_space<vmem>>, vector<1x128xf32>
    %23 = vector.broadcast %22 : vector<1x128xf32> to vector<4x128xf32>
    %24 = arith.addf %21, %23 : vector<4x128xf32>
    %c0_12 = arith.constant 0 : index
    %c0_13 = arith.constant 0 : index
    %25 = vector.load %arg5[%c0_12, %c0_13] : memref<4x128xf32, #tpu.memory_space<vmem>>, vector<4x128xf32>
    tpu.vector_store %arg5[%c0_12, %c0_13], %24 {strides = array<i32>} : memref<4x128xf32, #tpu.memory_space<vmem>>, vector<4x128xf32>,
    return
  }
  func.func @transform_0(%arg0: i32) -> (i32, i32) {
    %c0_i32 = arith.constant 0 : i32
    %c0_i32_0 = arith.constant 0 : i32
    return %arg0, %c0_i32 : i32, i32
  }
  func.func @transform_1(%arg0: i32) -> (i32, i32) {
    %c0_i32 = arith.constant 0 : i32
    %c0_i32_0 = arith.constant 0 : i32
    %c0_i32_1 = arith.constant 0 : i32
    return %c0_i32, %c0_i32_0 : i32, i32
  }
  func.func @transform_2(%arg0: i32) -> (i32, i32) {
    %c0_i32 = arith.constant 0 : i32
    %c0_i32_0 = arith.constant 0 : i32
    %c0_i32_1 = arith.constant 0 : i32
    return %c0_i32, %c0_i32_0 : i32, i32
  }
  func.func @transform_3(%arg0: i32) -> (i32, i32) {
    %c0_i32 = arith.constant 0 : i32
    %c0_i32_0 = arith.constant 0 : i32
    %c0_i32_1 = arith.constant 0 : i32
    return %c0_i32, %c0_i32_0 : i32, i32
  }
  func.func @transform_4(%arg0: i32) -> (i32, i32) {
    %c0_i32 = arith.constant 0 : i32
    %c0_i32_0 = arith.constant 0 : i32
    return %arg0, %c0_i32 : i32, i32
  }
}

</mosaic_0001>

<llo_original>
// kernel: tpu_custom_call.1
$region0: #{tpu_custom_call.1}
  #allocation0 [shape = 'u32[]', space=smem, size = 0x4, offset = 0x4, fixed_abs, tag = 'smem constant byte address 0x4 - core index']
  #allocation1 [shape = 'u32[144,128]{1,0:T(1,128)}', space=vmem, size = 0x12000, scoped, tag = 'internal scratch']
  %s0 = inlined_call_operand.hbm [shape: f32[4,128], index: 0, kind: input, shape index: {}]
  %s1 = inlined_call_operand.vmem [shape: f32[1,128], index: 1, kind: input, shape index: {}]
  %s2 = inlined_call_operand.vmem [shape: f32[1,128], index: 2, kind: input, shape index: {}]
  %s3 = inlined_call_operand.hbm [shape: f32[128,128], index: 3, kind: input, shape index: {}]
  %s4 = inlined_call_operand.hbm [shape: f32[4,128], index: 4, kind: output, shape index: {}]
  %s5 = sld [smem:[#allocation0]]
  $region34: #{tpu_custom_call.1} parent=0
    _
  %s7 = ssub.s32 1, %s5
  %s8 = scalar_select 0, %s7, %s5
  $region1: #{tpu_custom_call.1} parent=0
    #allocation2 [shape = 'u8[2048]{0}', space=vmem, size = 0x800, scoped, tag = 'input window, operand 0, single buffered']
    #allocation3 [shape = 's32[1]{0}', space=sflag, size = 0x4, scoped, tag = 'scoped memory for tpu_custom_call.1']
    #allocation4 [shape = 's32[1]{0}', space=sflag, size = 0x4, scoped, tag = 'scoped memory for tpu_custom_call.1']
    #allocation5 [shape = 'u8[65536]{0}', space=vmem, size = 0x10000, scoped, tag = 'input window, operand 3, single buffered']
    #allocation6 [shape = 's32[1]{0}', space=sflag, size = 0x4, scoped, tag = 'scoped memory for tpu_custom_call.1']
    #allocation7 [shape = 'u8[2048]{0}', space=vmem, size = 0x800, scoped, tag = 'output window, operand 0, single buffered']
    %9 = vsyncpa [#allocation3], 0
    %10 = vsyncpa [#allocation6], 0
    %11 = vsyncpa [#allocation4], 0
    // Predicated region
    $region2: #{tpu_custom_call.1} parent=1 // pred_check
      _
    $region3: #{tpu_custom_call.1} parent=1 // pred_check_branch
      %13 = sbr.rel (0) target = $region5
    $region4: #{tpu_custom_call.1} parent=1 // pred_region
      %s15 = ssub.s32 64, 64
      %16 = vsyncadd [#allocation3], %s15
      %s18 = sshll.u32 [#allocation2], 4
      %s19 = int_to_ptr.vmem [resolvable:$true] %s18
      %21 = dma.hbm_to_vmem [thread:$0]  %s0, 64, %s19, [#allocation3]
    $region5: #{tpu_custom_call.1} parent=1 // pred_fallthru
      _
    // Predicated region
    $region6: #{tpu_custom_call.1} parent=1 // pred_check
      _
    $region7: #{tpu_custom_call.1} parent=1 // pred_check_branch
      %23 = sbr.rel (0) target = $region9
    $region8: #{tpu_custom_call.1} parent=1 // pred_region
      _
    $region9: #{tpu_custom_call.1} parent=1 // pred_fallthru
      _
    // Predicated region
    $region10: #{tpu_custom_call.1} parent=1 // pred_check
      _
    $region11: #{tpu_custom_call.1} parent=1 // pred_check_branch
      %25 = sbr.rel (0) target = $region13
    $region12: #{tpu_custom_call.1} parent=1 // pred_region
      _
    $region13: #{tpu_custom_call.1} parent=1 // pred_fallthru
      _
    // Predicated region
    $region14: #{tpu_custom_call.1} parent=1 // pred_check
      _
    $region15: #{tpu_custom_call.1} parent=1 // pred_check_branch
      %27 = sbr.rel (0) target = $region17
    $region16: #{tpu_custom_call.1} parent=1 // pred_region
      %s29 = ssub.s32 2048, 2048
      %30 = vsyncadd [#allocation6], %s29
      %s31 = sshll.u32 [#allocation5], 4
      %s32 = int_to_ptr.vmem [resolvable:$true] %s31
      %37 = dma.hbm_to_vmem [thread:$0]  %s3, 2048, %s32, [#allocation6], 128, 128, 8
    $region17: #{tpu_custom_call.1} parent=1 // pred_fallthru
      _
    // Predicated region
    $region18: #{tpu_custom_call.1} parent=1 // pred_check
      _
    $region19: #{tpu_custom_call.1} parent=1 // pred_check_branch
      %39 = sbr.rel (0) target = $region21
    $region20: #{tpu_custom_call.1} parent=1 // pred_region
      %40 = dma.done [#allocation3], 64
    $region21: #{tpu_custom_call.1} parent=1 // pred_fallthru
      _
    // Predicated region
    $region22: #{tpu_custom_call.1} parent=1 // pred_check
      _
    $region23: #{tpu_custom_call.1} parent=1 // pred_check_branch
      %42 = sbr.rel (0) target = $region25
    $region24: #{tpu_custom_call.1} parent=1 // pred_region
      %43 = dma.done [#allocation6], 2048
    $region25: #{tpu_custom_call.1} parent=1 // pred_fallthru
      _
    %v44 = vld [vmem:[#allocation2] sm:$0xf]
    %v45 = vld [vmem:[#allocation5] sm:$0xff]
    %v46 = vld [vmem:[#allocation5 + $0x8] sm:$0xff]
    %v47 = vld [vmem:[#allocation5 + $0x10] sm:$0xff]
    %v48 = vld [vmem:[#allocation5 + $0x18] sm:$0xff]
    %v49 = vld [vmem:[#allocation5 + $0x20] sm:$0xff]
    %v50 = vld [vmem:[#allocation5 + $0x28] sm:$0xff]
    %v51 = vld [vmem:[#allocation5 + $0x30] sm:$0xff]
    %v52 = vld [vmem:[#allocation5 + $0x38] sm:$0xff]
    %v53 = vld [vmem:[#allocation5 + $0x40] sm:$0xff]
    %v54 = vld [vmem:[#allocation5 + $0x48] sm:$0xff]
    %v55 = vld [vmem:[#allocation5 + $0x50] sm:$0xff]
    %v56 = vld [vmem:[#allocation5 + $0x58] sm:$0xff]
    %v57 = vld [vmem:[#allocation5 + $0x60] sm:$0xff]
    %v58 = vld [vmem:[#allocation5 + $0x68] sm:$0xff]
    %v59 = vld [vmem:[#allocation5 + $0x70] sm:$0xff]
    %v60 = vld [vmem:[#allocation5 + $0x78] sm:$0xff]
    %61 = vmatprep.subr.mxu0 0.0
    %62 = vmatpush1.msra.mxu0 %v45
    %63 = vmatprep.subr.mxu0 0.0
    %64 = vmatpush1.msra.mxu0 %v46
    %65 = vmatprep.subr.mxu0 0.0
    %66 = vmatpush1.msra.mxu0 %v47
    %67 = vmatprep.subr.mxu0 0.0
    %68 = vmatpush1.msra.mxu0 %v48
    %69 = vmatprep.subr.mxu0 0.0
    %70 = vmatpush1.msra.mxu0 %v49
    %71 = vmatprep.subr.mxu0 0.0
    %72 = vmatpush1.msra.mxu0 %v50
    %73 = vmatprep.subr.mxu0 0.0
    %74 = vmatpush1.msra.mxu0 %v51
    %75 = vmatprep.subr.mxu0 0.0
    %76 = vmatpush1.msra.mxu0 %v52
    %77 = vmatprep.subr.mxu0 0.0
    %78 = vmatpush1.msra.mxu0 %v53
    %79 = vmatprep.subr.mxu0 0.0
    %80 = vmatpush1.msra.mxu0 %v54
    %81 = vmatprep.subr.mxu0 0.0
    %82 = vmatpush1.msra.mxu0 %v55
    %83 = vmatprep.subr.mxu0 0.0
    %84 = vmatpush1.msra.mxu0 %v56
    %85 = vmatprep.subr.mxu0 0.0
    %86 = vmatpush1.msra.mxu0 %v57
    %87 = vmatprep.subr.mxu0 0.0
    %88 = vmatpush1.msra.mxu0 %v58
    %89 = vmatprep.subr.mxu0 0.0
    %90 = vmatpush1.msra.mxu0 %v59
    %91 = vmatprep.subr.mxu0 0.0
    %92 = vmatpush1.msra.mxu0 %v60
    %93 = vmatprep.subr.mxu0 0.0
    %94 = vmatpush1.msra.mxu0 0.0
    %95 = vmatprep.subr.mxu0 0.0
    %96 = vmatpush1.msra.mxu0 0.0
    %97 = vmatprep.subr.mxu0 0.0
    %98 = vmatpush1.msra.mxu0 0.0
    %99 = vmatprep.subr.mxu0 0.0
    %100 = vmatpush1.msra.mxu0 0.0
    %101 = vmatprep.subr.mxu0 0.0
    %102 = vmatpush1.msra.mxu0 0.0
    %103 = vmatprep.subr.mxu0 0.0
    %104 = vmatpush1.msra.mxu0 0.0
    %105 = vmatprep.subr.mxu0 0.0
    %106 = vmatpush1.msra.mxu0 0.0
    %107 = vmatprep.subr.mxu0 0.0
    %108 = vmatpush1.msra.mxu0 0.0
    %109 = vmatprep.subr.mxu0 0.0
    %110 = vmatpush1.msra.mxu0 0.0
    %111 = vmatprep.subr.mxu0 0.0
    %112 = vmatpush1.msra.mxu0 0.0
    %113 = vmatprep.subr.mxu0 0.0
    %114 = vmatpush1.msra.mxu0 0.0
    %115 = vmatprep.subr.mxu0 0.0
    %116 = vmatpush1.msra.mxu0 0.0
    %117 = vmatprep.subr.mxu0 0.0
    %118 = vmatpush1.msra.mxu0 0.0
    %119 = vmatprep.subr.mxu0 0.0
    %120 = vmatpush1.msra.mxu0 0.0
    %121 = vmatprep.subr.mxu0 0.0
    %122 = vmatpush1.msra.mxu0 0.0
    %123 = vmatprep.subr.mxu0 0.0
    %124 = vmatpush1.msra.mxu0 0.0
    %125 = vmatprep.mubr.f32.mxu0 0.0
    %126 = vmatmul.mubr.f32.gmra.mrb[0].mxu0 %v44
    %v127 = vpop.f32.mrb[0].mxu0
    %v128 = vadd.f32 0.0, %v127
    %v129 = vpop.f32.mrb[0].mxu0
    %130 = vdwg.mxu0
    %v131 = vmul.f32 %v44, %v44
    %132 = vmatprep.subr.mxu0 0.0
    %133 = vmatpush1.msra.mxu0 %v45
    %134 = vmatprep.subr.mxu0 0.0
    %135 = vmatpush1.msra.mxu0 %v46
    %136 = vmatprep.subr.mxu0 0.0
    %137 = vmatpush1.msra.mxu0 %v47
    %138 = vmatprep.subr.mxu0 0.0
    %139 = vmatpush1.msra.mxu0 %v48
    %140 = vmatprep.subr.mxu0 0.0
    %141 = vmatpush1.msra.mxu0 %v49
    %142 = vmatprep.subr.mxu0 0.0
    %143 = vmatpush1.msra.mxu0 %v50
    %144 = vmatprep.subr.mxu0 0.0
    %145 = vmatpush1.msra.mxu0 %v51
    %146 = vmatprep.subr.mxu0 0.0
    %147 = vmatpush1.msra.mxu0 %v52
    %148 = vmatprep.subr.mxu0 0.0
    %149 = vmatpush1.msra.mxu0 %v53
    %150 = vmatprep.subr.mxu0 0.0
    %151 = vmatpush1.msra.mxu0 %v54
    %152 = vmatprep.subr.mxu0 0.0
    %153 = vmatpush1.msra.mxu0 %v55
    %154 = vmatprep.subr.mxu0 0.0
    %155 = vmatpush1.msra.mxu0 %v56
    %156 = vmatprep.subr.mxu0 0.0
    %157 = vmatpush1.msra.mxu0 %v57
    %158 = vmatprep.subr.mxu0 0.0
    %159 = vmatpush1.msra.mxu0 %v58
    %160 = vmatprep.subr.mxu0 0.0
    %161 = vmatpush1.msra.mxu0 %v59
    %162 = vmatprep.subr.mxu0 0.0
    %163 = vmatpush1.msra.mxu0 %v60
    %164 = vmatprep.subr.mxu0 0.0
    %165 = vmatpush1.msra.mxu0 0.0
    %166 = vmatprep.subr.mxu0 0.0
    %167 = vmatpush1.msra.mxu0 0.0
    %168 = vmatprep.subr.mxu0 0.0
    %169 = vmatpush1.msra.mxu0 0.0
    %170 = vmatprep.subr.mxu0 0.0
    %171 = vmatpush1.msra.mxu0 0.0
    %172 = vmatprep.subr.mxu0 0.0
    %173 = vmatpush1.msra.mxu0 0.0
    %174 = vmatprep.subr.mxu0 0.0
    %175 = vmatpush1.msra.mxu0 0.0
    %176 = vmatprep.subr.mxu0 0.0
    %177 = vmatpush1.msra.mxu0 0.0
    %178 = vmatprep.subr.mxu0 0.0
    %179 = vmatpush1.msra.mxu0 0.0
    %180 = vmatprep.subr.mxu0 0.0
    %181 = vmatpush1.msra.mxu0 0.0
    %182 = vmatprep.subr.mxu0 0.0
    %183 = vmatpush1.msra.mxu0 0.0
    %184 = vmatprep.subr.mxu0 0.0
    %185 = vmatpush1.msra.mxu0 0.0
    %186 = vmatprep.subr.mxu0 0.0
    %187 = vmatpush1.msra.mxu0 0.0
    %188 = vmatprep.subr.mxu0 0.0
    %189 = vmatpush1.msra.mxu0 0.0
    %190 = vmatprep.subr.mxu0 0.0
    %191 = vmatpush1.msra.mxu0 0.0
    %192 = vmatprep.subr.mxu0 0.0
    %193 = vmatpush1.msra.mxu0 0.0
    %194 = vmatprep.subr.mxu0 0.0
    %195 = vmatpush1.msra.mxu0 0.0
    %196 = vmatprep.mubr.f32.mxu0 0.0
    %197 = vmatmul.mubr.f32.gmra.mrb[0].mxu0 %v131
    %v198 = vpop.f32.mrb[0].mxu0
    %v199 = vadd.f32 0.0, %v198
    %v200 = vpop.f32.mrb[0].mxu0
    %201 = vdwg.mxu0
    %v202 = vmul.f32 %v128, 0.03125
    %v203 = vmul.f32 %v128, %v202
    %v204 = vsub.f32 %v199, %v203
    %v205 = vmax.f32 %v204, 0.0
    %v206 = vmul.f32 %v205, 0.032258064
    %v207 = vrsqrt.pop %v206
    %v208 = vmul.f32 %v206, %v207
    %vm209 = vcmp.eq.f32.partialorder %v206, inf
    %v210 = vsel %vm209, %v206, %v208
    %vm211 = vcmp.eq.f32.partialorder %v206, 0.0
    %v212 = vand.u32 %v206, 2147483648
    %v213 = vsel %vm211, %v212, %v210
    %v214 = vadd.f32 %v213, 1e-06
    %v215 = vrcp.pop %v214
    %v216 = vsub.f32 %v44, %v202
    %v217 = vld [vmem:[%s1] sm:$0x1]
    %v219 = vlaneseq
    %v220 = vshrl.u32 %v219, 7
    %v221 = vsub.s32 0, %v220
    %v222 = vrot.slane %v217, %v221
    %v224 = vmul.f32 %v222, %v215
    %v225 = vmul.f32 %v216, %v224
    %v226 = vld [vmem:[%s2] sm:$0x1]
    %v228 = vlaneseq
    %v229 = vshrl.u32 %v228, 7
    %v230 = vsub.s32 0, %v229
    %v231 = vrot.slane %v226, %v230
    %v233 = vadd.f32 %v225, %v231
    %234 = vst [vmem:[#allocation7] sm:$0xf] %v233
    // Predicated region
    $region26: #{tpu_custom_call.1} parent=1 // pred_check
      _
    $region27: #{tpu_custom_call.1} parent=1 // pred_check_branch
      %236 = sbr.rel (0) target = $region29
    $region28: #{tpu_custom_call.1} parent=1 // pred_region
      %s238 = ssub.s32 64, 64
      %239 = vsyncadd [#allocation4], %s238
      %s241 = sshll.u32 [#allocation7], 4
      %s242 = int_to_ptr.vmem [resolvable:$true] %s241
      %244 = dma.vmem_to_hbm [thread:$0]  %s242, 64, %s4, [#allocation4]
    $region29: #{tpu_custom_call.1} parent=1 // pred_fallthru
      _
    // Predicated region
    $region30: #{tpu_custom_call.1} parent=1 // pred_check
      _
    $region31: #{tpu_custom_call.1} parent=1 // pred_check_branch
      %246 = sbr.rel (0) target = $region33
    $region32: #{tpu_custom_call.1} parent=1 // pred_region
      %247 = dma.done [#allocation4], 64
    $region33: #{tpu_custom_call.1} parent=1 // pred_fallthru
      _
    %248 = vsyncpa [#allocation3], 1
    %249 = vsyncpa [#allocation6], 1
    %250 = vsyncpa [#allocation4], 1

</llo_original>
